<compile_context>
chip_gen: v7x
topology: tpu7x:2x2x1
jax: 0.10.0
libtpu: 0.0.40
codegen_flags: <defaults>
</compile_context>

<pallas_src>
import numpy as np
import jax
import jax.numpy as jnp
from jax.experimental import pallas as pl
from jax.experimental.pallas import tpu as pltpu


def _cdiv(a, b):
    return -(-a // b)


def _downsample_pallas(x, taps, stride, padding):
    """Anti-aliased 1-D downsample of x:(N, C, L) with identical per-channel taps."""
    N, C, L = x.shape
    s, p, K = stride, padding, len(taps)
    L_out = (L + 2 * p - K) // s + 1
    assert L_out > 0, "Input too short for this factor/order."
    M = N * C

    # Phase decomposition: writing tap index k = q*s + r gives
    #   out[m, j] = sum_k taps[k] * x_pad[m, j*s + k] = sum_{q,r} taps[q*s+r] * x_r[r, m, j+q]
    qmax = (K - 1) // s                  # max column shift needed (<= order, tiny)
    HALO = 128                           # one lane-group of halo from the next tile
    use_halo = qmax > 0
    assert qmax < HALO

    # ---- tile sizes: lane-dense, comfortably inside the default scoped-VMEM limit ----
    if s <= 2:
        tL_cap = 1024
    elif s <= 4:
        tL_cap = 512
    else:
        tL_cap = 256
    tL = min(tL_cap, 128 * _cdiv(L_out, 128))   # output-length tile (lanes)
    tM = min(256, 8 * _cdiv(M, 8))              # row tile (N*C rows, sublanes)
    L_tiles = _cdiv(L_out, tL)
    M_tiles = _cdiv(M, tM)
    M_pad = M_tiles * tM
    n_cols = L_tiles * tL + (HALO if use_halo else 0)   # phase-decomposed length

    # Output tile actually stored (<= compute tile; edge tiles are masked by Pallas).
    tMo = min(tM, M)
    tLo = min(tL, L_out)

    # ---- single wrapper-side relayout: pad + phase-decompose (one HBM round-trip) ----
    right = n_cols * s - L - p                  # right zero-pad (>= p by construction)
    assert right >= p >= 0
    x2 = x.reshape(M, L)
    xp = jnp.pad(x2, ((0, M_pad - M), (p, right)))
    # x_r[r, m, q] = x_padded[m, q*s + r]  -> shape (s, M_pad, n_cols), lane-dense.
    x_r = jnp.transpose(xp.reshape(M_pad, n_cols, s), (2, 0, 1))

    def kernel(*refs):
        if use_halo:
            x_ref, h_ref, o_ref = refs
            xc = jnp.concatenate([x_ref[...], h_ref[...]], axis=-1)  # (s, tM, tL+HALO)
        else:
            x_ref, o_ref = refs
            xc = x_ref[...]
        xc = xc.astype(jnp.float32)
        acc = taps[0] * xc[0, :, 0:tL]
        for k in range(1, K):            # K is small & static -> fully unrolled
            q, r = divmod(k, s)
            # out[m, j] += taps[k] * x_pad[m, j*s + k] == taps[k] * x_r[r, m, j+q]
            acc = acc + taps[k] * xc[r, :, q:q + tL]
        o_ref[...] = acc[:tMo, :tLo].astype(o_ref.dtype)

    in_specs = [pl.BlockSpec((s, tM, tL), lambda i, j: (0, i, j))]
    operands = [x_r]
    if use_halo:
        # Halo = first HALO columns of the next length tile (element offset (j+1)*tL).
        in_specs.append(
            pl.BlockSpec((s, tM, HALO), lambda i, j: (0, i, (j + 1) * (tL // HALO))))
        operands.append(x_r)

    out = pl.pallas_call(
        kernel,
        out_shape=jax.ShapeDtypeStruct((M, L_out), x.dtype),
        grid=(M_tiles, L_tiles),
        in_specs=in_specs,
        out_specs=pl.BlockSpec((tMo, tLo), lambda i, j: (i, j)),
        compiler_params=pltpu.CompilerParams(
            dimension_semantics=("parallel", "parallel")),
    )(*operands)

    # Output is already exactly (M, L_out): free view back to (N, C, L_out).
    return out.reshape(N, C, L_out)


class Downsample:
    """Anti-aliased downsampling (forward pass of the PyTorch `Downsample`)."""

    def __init__(self, channels=None, factor=2, order=1):
        assert factor > 1, "Downsampling factor must be > 1"
        self.stride = factor
        self.channels = channels
        self.order = order
        total_padding = order * (factor - 1)
        assert total_padding % 2 == 0, (
            "Misspecified downsampling parameters. Downsampling factor and order "
            "must be such that order*(factor-1) is divisible by 2")
        self.padding = total_padding // 2

        # Deterministic filter construction, identical to the PyTorch __init__.
        box_kernel = np.ones(factor)
        kernel = np.ones(factor)
        for _ in range(order):
            kernel = np.convolve(kernel, box_kernel)
        kernel = kernel / np.sum(kernel)
        self.K = kernel.shape[0]
        # Taps are identical across channels -> bake as Python float constants.
        self.taps = tuple(float(t) for t in kernel)
        # PyTorch-layout (C, 1, K) copy, used only by the reference check below.
        self.w_ref = None
        if channels is not None:
            self.w_ref = jnp.asarray(
                np.tile(kernel[None, None, :], (channels, 1, 1)), dtype=jnp.float32)

    def __call__(self, x):
        N, C, L = x.shape
        if self.channels is not None:
            assert C == self.channels
        return _downsample_pallas(x, self.taps, self.stride, self.padding)


def _reference(x, ds):
    return jax.lax.conv_general_dilated(
        x, ds.w_ref,
        window_strides=(ds.stride,),
        padding=[(ds.padding, ds.padding)],
        dimension_numbers=("NCH", "OIH", "NCH"),
        feature_group_count=x.shape[1])


if __name__ == "__main__":
    key = jax.random.PRNGKey(0)
    N, C, L = 2, 4, 16
    x = jax.random.normal(key, (N, C, L), dtype=jnp.float32)

    # factor=2, order=2: order*(factor-1)=2 is even -> valid parameters.
    ds = Downsample(channels=C, factor=2, order=2)
    out = jax.block_until_ready(ds(x))
    L_out = (L + 2 * ds.padding - ds.K) // ds.stride + 1
    assert out.shape == (N, C, L_out)
    np.testing.assert_allclose(np.asarray(out), np.asarray(_reference(x, ds)),
                               rtol=1e-5, atol=1e-5)

    # factor=3, order=1 (total padding 2, halo path with stride 3).
    ds3 = Downsample(channels=C, factor=3, order=1)
    out3 = jax.block_until_ready(ds3(x))
    np.testing.assert_allclose(np.asarray(out3), np.asarray(_reference(x, ds3)),
                               rtol=1e-5, atol=1e-5)

    # factor=2, order=0 (box filter / AvgPool): exercises the halo-free path.
    ds0 = Downsample(channels=C, factor=2, order=0)
    out0 = jax.block_until_ready(ds0(x))
    np.testing.assert_allclose(np.asarray(out0), np.asarray(_reference(x, ds0)),
                               rtol=1e-5, atol=1e-5)

    print("KERNEL_OK")
</pallas_src>

<mosaic_0001>
module attributes {stable_mosaic.version = 11 : i64} {
  func.func @kernel(%arg0: i32, %arg1: i32, %arg2: memref<2x8x128xf32, #tpu.memory_space<vmem>>, %arg3: memref<2x8x128xf32, #tpu.memory_space<vmem>>, %arg4: memref<8x8xf32, #tpu.memory_space<vmem>>) attributes {dimension_semantics = [#tpu.dimension_semantics<parallel>, #tpu.dimension_semantics<parallel>], iteration_bounds = array<i64: 1, 1>, scalar_prefetch = 0 : i64, scratch_operands = 0 : i64, tpu.core_type = #tpu.core_type<tc>, window_params = [{transform_indices = @transform_0, window_bounds = array<i64: 2, 8, 128>}, {transform_indices = @transform_1, window_bounds = array<i64: 2, 8, 128>}, {transform_indices = @transform_2, window_bounds = array<i64: 8, 8>}]} {
    %c0 = arith.constant 0 : index
    %c0_0 = arith.constant 0 : index
    %c0_1 = arith.constant 0 : index
    %0 = vector.load %arg2[%c0, %c0_0, %c0_1] : memref<2x8x128xf32, #tpu.memory_space<vmem>>, vector<2x8x128xf32>
    %c0_2 = arith.constant 0 : index
    %c0_3 = arith.constant 0 : index
    %c0_4 = arith.constant 0 : index
    %1 = vector.load %arg3[%c0_2, %c0_3, %c0_4] : memref<2x8x128xf32, #tpu.memory_space<vmem>>, vector<2x8x128xf32>
    %2 = tpu.concatenate %0, %1 in 2 : vector<2x8x128xf32>, vector<2x8x128xf32> -> vector<2x8x256xf32>
    %3 = vector.extract_strided_slice %2 {offsets = [0, 0, 0], sizes = [1, 8, 128], strides = [1, 1, 1]} : vector<2x8x256xf32> to vector<1x8x128xf32>
    %4 = vector.shape_cast %3 : vector<1x8x128xf32> to vector<8x128xf32>
    %cst = arith.constant 1.250000e-01 : f32
    %5 = vector.broadcast %cst : f32 to vector<8x128xf32>
    %6 = arith.mulf %5, %4 : vector<8x128xf32>
    %7 = vector.extract_strided_slice %2 {offsets = [1, 0, 0], sizes = [1, 8, 128], strides = [1, 1, 1]} : vector<2x8x256xf32> to vector<1x8x128xf32>
    %8 = vector.shape_cast %7 : vector<1x8x128xf32> to vector<8x128xf32>
    %cst_5 = arith.constant 3.750000e-01 : f32
    %9 = vector.broadcast %cst_5 : f32 to vector<8x128xf32>
    %10 = arith.mulf %9, %8 : vector<8x128xf32>
    %11 = arith.addf %6, %10 : vector<8x128xf32>
    %12 = vector.extract_strided_slice %2 {offsets = [0, 0, 1], sizes = [1, 8, 128], strides = [1, 1, 1]} : vector<2x8x256xf32> to vector<1x8x128xf32>
    %13 = vector.shape_cast %12 : vector<1x8x128xf32> to vector<8x128xf32>
    %cst_6 = arith.constant 3.750000e-01 : f32
    %14 = vector.broadcast %cst_6 : f32 to vector<8x128xf32>
    %15 = arith.mulf %14, %13 : vector<8x128xf32>
    %16 = arith.addf %11, %15 : vector<8x128xf32>
    %17 = vector.extract_strided_slice %2 {offsets = [1, 0, 1], sizes = [1, 8, 128], strides = [1, 1, 1]} : vector<2x8x256xf32> to vector<1x8x128xf32>
    %18 = vector.shape_cast %17 : vector<1x8x128xf32> to vector<8x128xf32>
    %cst_7 = arith.constant 1.250000e-01 : f32
    %19 = vector.broadcast %cst_7 : f32 to vector<8x128xf32>
    %20 = arith.mulf %19, %18 : vector<8x128xf32>
    %21 = arith.addf %16, %20 : vector<8x128xf32>
    %22 = vector.extract_strided_slice %21 {offsets = [0, 0], sizes = [8, 8], strides = [1, 1]} : vector<8x128xf32> to vector<8x8xf32>
    %c0_8 = arith.constant 0 : index
    %c0_9 = arith.constant 0 : index
    %23 = vector.load %arg4[%c0_8, %c0_9] : memref<8x8xf32, #tpu.memory_space<vmem>>, vector<8x8xf32>
    tpu.vector_store %arg4[%c0_8, %c0_9], %22 {strides = array<i32>} : memref<8x8xf32, #tpu.memory_space<vmem>>, vector<8x8xf32>,
    return
  }
  func.func @transform_0(%arg0: i32, %arg1: i32) -> (i32, i32, i32) {
    %c0_i32 = arith.constant 0 : i32
    %c0_i32_0 = arith.constant 0 : i32
    return %c0_i32, %arg0, %arg1 : i32, i32, i32
  }
  func.func @transform_1(%arg0: i32, %arg1: i32) -> (i32, i32, i32) {
    %c1_i32 = arith.constant 1 : i32
    %0 = arith.addi %arg1, %c1_i32 : i32
    %c1_i32_0 = arith.constant 1 : i32
    %1 = arith.muli %0, %c1_i32_0 : i32
    %c0_i32 = arith.constant 0 : i32
    %c0_i32_1 = arith.constant 0 : i32
    return %c0_i32, %arg0, %1 : i32, i32, i32
  }
  func.func @transform_2(%arg0: i32, %arg1: i32) -> (i32, i32) {
    %c0_i32 = arith.constant 0 : i32
    return %arg0, %arg1 : i32, i32
  }
}

</mosaic_0001>

<llo_original>
// kernel: tpu_custom_call.1
$region0: #{tpu_custom_call.1}
  #allocation0 [shape = 'u32[]', space=smem, size = 0x4, offset = 0x4, fixed_abs, tag = 'smem constant byte address 0x4 - core index']
  #allocation1 [shape = 'u32[144,128]{1,0:T(1,128)}', space=vmem, size = 0x12000, scoped, tag = 'internal scratch']
  %s0 = inlined_call_operand.hbm [shape: f32[2,8,256], index: 0, kind: input, shape index: {}]
  %s1 = inlined_call_operand.hbm [shape: f32[2,8,256], index: 1, kind: input, shape index: {}]
  %s2 = inlined_call_operand.hbm [shape: f32[8,8], index: 2, kind: output, shape index: {}]
  %s3 = sld [smem:[#allocation0]]
  $region26: #{tpu_custom_call.1} parent=0
    _
  %s5 = ssub.s32 1, %s3
  %s6 = scalar_select 0, %s5, %s3
  $region1: #{tpu_custom_call.1} parent=0
    #allocation2 [shape = 'u8[8192]{0}', space=vmem, size = 0x2000, scoped, tag = 'input window, operand 0, single buffered']
    #allocation3 [shape = 's32[1]{0}', space=sflag, size = 0x4, scoped, tag = 'scoped memory for tpu_custom_call.1']
    #allocation4 [shape = 's32[1]{0}', space=sflag, size = 0x4, scoped, tag = 'scoped memory for tpu_custom_call.1']
    #allocation5 [shape = 'u8[8192]{0}', space=vmem, size = 0x2000, scoped, tag = 'input window, operand 1, single buffered']
    #allocation6 [shape = 's32[1]{0}', space=sflag, size = 0x4, scoped, tag = 'scoped memory for tpu_custom_call.1']
    #allocation7 [shape = 'u8[4096]{0}', space=vmem, size = 0x1000, scoped, tag = 'output window, operand 0, single buffered']
    %7 = vsyncpa [#allocation3], 0
    %8 = vsyncpa [#allocation6], 0
    %9 = vsyncpa [#allocation4], 0
    // Predicated region
    $region2: #{tpu_custom_call.1} parent=1 // pred_check
      _
    $region3: #{tpu_custom_call.1} parent=1 // pred_check_branch
      %11 = sbr.rel (0) target = $region5
    $region4: #{tpu_custom_call.1} parent=1 // pred_region
      %s13 = ssub.s32 256, 256
      %14 = vsyncadd [#allocation3], %s13
      %s15 = sshll.u32 [#allocation2], 4
      %s16 = int_to_ptr.vmem [resolvable:$true] %s15
      %21 = dma.hbm_to_vmem [thread:$0]  %s0, 256, %s16, [#allocation3], 256, 128, 8
    $region5: #{tpu_custom_call.1} parent=1 // pred_fallthru
      _
    // Predicated region
    $region6: #{tpu_custom_call.1} parent=1 // pred_check
      _
    $region7: #{tpu_custom_call.1} parent=1 // pred_check_branch
      %23 = sbr.rel (0) target = $region9
    $region8: #{tpu_custom_call.1} parent=1 // pred_region
      %s24 = sadd.s32 0, 1
      %s26 = ssub.s32 256, 256
      %27 = vsyncadd [#allocation6], %s26
      %s28 = smul.addr %s24, 128
      %s29 = scalar_lea.hbm %s1, %s28
      %s30 = sshll.u32 [#allocation5], 4
      %s31 = int_to_ptr.vmem [resolvable:$true] %s30
      %36 = dma.hbm_to_vmem [thread:$0]  %s29, 256, %s31, [#allocation6], 256, 128, 8
    $region9: #{tpu_custom_call.1} parent=1 // pred_fallthru
      _
    // Predicated region
    $region10: #{tpu_custom_call.1} parent=1 // pred_check
      _
    $region11: #{tpu_custom_call.1} parent=1 // pred_check_branch
      %38 = sbr.rel (0) target = $region13
    $region12: #{tpu_custom_call.1} parent=1 // pred_region
      %39 = dma.done [#allocation3], 256
    $region13: #{tpu_custom_call.1} parent=1 // pred_fallthru
      _
    // Predicated region
    $region14: #{tpu_custom_call.1} parent=1 // pred_check
      _
    $region15: #{tpu_custom_call.1} parent=1 // pred_check_branch
      %41 = sbr.rel (0) target = $region17
    $region16: #{tpu_custom_call.1} parent=1 // pred_region
      %42 = dma.done [#allocation6], 256
    $region17: #{tpu_custom_call.1} parent=1 // pred_fallthru
      _
    %s43 = sadd.s32 0, 1
    %v44 = vld [vmem:[#allocation2] sm:$0xff]
    %v45 = vld [vmem:[#allocation2 + $0x8] sm:$0xff]
    %v46 = vld [vmem:[#allocation5] sm:$0xff]
    %v47 = vld [vmem:[#allocation5 + $0x8] sm:$0xff]
    %v48 = vmul.f32 %v44, 0.125
    %v49 = vmul.f32 %v45, 0.375
    %v50 = vadd.f32 %v48, %v49
    %v51 = vmul.f32 %v44, 0.375
    %v52 = vmul.f32 %v46, 0.375
    %55 = vrot.lane.b32.xlu0 %v51, 127
    %v56 = vpop.permute.xlu0 %55
    %57 = vrot.lane.b32.xlu0 %v52, 127
    %v58 = vpop.permute.xlu0 %57
    %vm59 = vcmask 1039360
    %v60 = vsel %vm59, %v56, %v58
    %v62 = vadd.f32 %v50, %v60
    %v63 = vmul.f32 %v45, 0.125
    %v64 = vmul.f32 %v47, 0.125
    %67 = vrot.lane.b32.xlu0 %v63, 127
    %v68 = vpop.permute.xlu0 %67
    %69 = vrot.lane.b32.xlu0 %v64, 127
    %v70 = vpop.permute.xlu0 %69
    %v71 = vsel %vm59, %v68, %v70
    %v73 = vadd.f32 %v62, %v71
    %vm74 = vcmask 64512
    %75 = vst.msk [vmem:[#allocation7] sm:$0xff] %vm74, %v73
    // Predicated region
    $region18: #{tpu_custom_call.1} parent=1 // pred_check
      _
    $region19: #{tpu_custom_call.1} parent=1 // pred_check_branch
      %77 = sbr.rel (0) target = $region21
    $region20: #{tpu_custom_call.1} parent=1 // pred_region
      %s79 = ssub.s32 128, 128
      %80 = vsyncadd [#allocation4], %s79
      %s82 = sshll.u32 [#allocation7], 4
      %s83 = int_to_ptr.vmem [resolvable:$true] %s82
      %85 = dma.vmem_to_hbm [thread:$0]  %s83, 128, %s2, [#allocation4]
    $region21: #{tpu_custom_call.1} parent=1 // pred_fallthru
      _
    // Predicated region
    $region22: #{tpu_custom_call.1} parent=1 // pred_check
      _
    $region23: #{tpu_custom_call.1} parent=1 // pred_check_branch
      %87 = sbr.rel (0) target = $region25
    $region24: #{tpu_custom_call.1} parent=1 // pred_region
      %88 = dma.done [#allocation4], 128
    $region25: #{tpu_custom_call.1} parent=1 // pred_fallthru
      _
    %89 = vsyncpa [#allocation3], 1
    %90 = vsyncpa [#allocation6], 1
    %91 = vsyncpa [#allocation4], 1

</llo_original>
